<compile_context>
chip_gen: v7x
topology: tpu7x:2x2x1
jax: 0.10.0
libtpu: 0.0.40
codegen_flags: <defaults>
</compile_context>

<pallas_src>
import math
import functools

import jax
import jax.numpy as jnp
from jax.experimental import pallas as pl
from jax.experimental.pallas import tpu as pltpu


def _round_up(x, m):
    return ((x + m - 1) // m) * m


def _sublane_multiple(dtype):
    return {4: 8, 2: 16, 1: 32}.get(jnp.dtype(dtype).itemsize, 8)


# ---------------- resident-weight kernels (whole W lives in VMEM) ----------------

def _resident_kernel_bias(x_ref, w_ref, b_ref, o_ref, *, scale):
    # x_ref: (tm, in_pad), w_ref: (in_pad, out_pad), b_ref: (1, out_pad)
    acc = jnp.dot(x_ref[...], w_ref[...], preferred_element_type=jnp.float32)
    acc = acc * scale + b_ref[...]          # bias already pre-multiplied by lr_mul
    o_ref[...] = acc.astype(o_ref.dtype)


def _resident_kernel_act(x_ref, w_ref, o_ref, *, scale):
    acc = jnp.dot(x_ref[...], w_ref[...], preferred_element_type=jnp.float32)
    acc = acc * scale
    # leaky_relu(a, 0.2) == max(a, 0.2*a) since 0.2 > 0
    o_ref[...] = jnp.maximum(acc, 0.2 * acc).astype(o_ref.dtype)


# ---------------- tiled fallback kernels (K-accumulation, large layers) ----------------

def _tiled_kernel_bias(x_ref, w_ref, b_ref, o_ref, acc_ref, *, scale):
    k = pl.program_id(2)

    @pl.when(k == 0)
    def _():
        acc_ref[...] = jnp.zeros_like(acc_ref)

    acc_ref[...] += jnp.dot(x_ref[...], w_ref[...], preferred_element_type=jnp.float32)

    @pl.when(k == pl.num_programs(2) - 1)
    def _():
        o_ref[...] = (acc_ref[...] * scale + b_ref[...]).astype(o_ref.dtype)


def _tiled_kernel_act(x_ref, w_ref, o_ref, acc_ref, *, scale):
    k = pl.program_id(2)

    @pl.when(k == 0)
    def _():
        acc_ref[...] = jnp.zeros_like(acc_ref)

    acc_ref[...] += jnp.dot(x_ref[...], w_ref[...], preferred_element_type=jnp.float32)

    @pl.when(k == pl.num_programs(2) - 1)
    def _():
        out = acc_ref[...] * scale
        o_ref[...] = jnp.maximum(out, 0.2 * out).astype(o_ref.dtype)


# ---------------- tile selection helpers ----------------

def _pick_batch_tile(b_pad, sub, cap):
    """Largest batch tile <= cap (multiple of `sub`) with bounded pad waste."""
    cap = max(sub, (cap // sub) * sub)
    if b_pad <= cap:
        return b_pad
    max_waste = max(sub, b_pad // 8)        # allow at most ~12.5% padded rows
    tm = cap
    while tm > sub:
        if _round_up(b_pad, tm) - b_pad <= max_waste:
            return tm
        tm -= sub
    return sub


def _pick_div_tile(dim, cap):
    """Largest of {cap, 512, 256, 128} that divides dim (dim is a multiple of 128)."""
    for c in (cap, 512, 256, 128):
        if c <= cap and dim % c == 0:
            return c
    return 128


# ---------------- wrapper ----------------

def equal_linear(x, weight, bias=None, *, lr_mul=1.0, activation=None,
                 compute_dtype=None):
    """Pallas TPU implementation of EqualLinear.forward (any leading dims on x)."""
    orig_shape = x.shape
    in_dim = orig_shape[-1]
    out_dim, in_dim_w = weight.shape
    assert in_dim == in_dim_w
    use_act = activation is not None
    if not use_act:
        assert bias is not None, "bias is required in the no-activation branch"

    scale = 1.0 / math.sqrt(in_dim) * lr_mul
    out_dtype = x.dtype

    x2 = x.reshape(-1, in_dim)
    B = x2.shape[0]

    # Optional lower-precision matmul inputs (f32 accumulate / f32 epilogue kept).
    if compute_dtype is not None:
        x2 = x2.astype(compute_dtype)
        weight = weight.astype(compute_dtype)

    x_dtype = x2.dtype
    sub = _sublane_multiple(x_dtype)
    x_bytes = jnp.dtype(x_dtype).itemsize
    w_bytes = jnp.dtype(weight.dtype).itemsize
    o_bytes = jnp.dtype(out_dtype).itemsize

    # Lane-dense feature padding (zeros don't change the contraction).
    in_pad = _round_up(in_dim, 128)
    out_pad = _round_up(out_dim, 128)

    # Pad + pre-transpose weight ONCE: (in_pad, out_pad) — MXU-native A@B layout.
    w_p = jnp.pad(weight, ((0, out_pad - out_dim), (0, in_pad - in_dim))).T

    bias_p = None
    if not use_act:
        bias_p = jnp.pad(
            (bias.astype(jnp.float32) * jnp.float32(lr_mul)).reshape(1, out_dim),
            ((0, 0), (0, out_pad - out_dim)))

    # ---- choose path from the VMEM footprint of the resident-weight design ----
    VMEM_BUDGET = 40 * 1024 * 1024          # leaves headroom even on v7x (64 MiB)
    resident_fixed = in_pad * out_pad * w_bytes               # W, single-buffered
    if not use_act:
        resident_fixed += out_pad * 4                          # bias (f32)
    per_row = 2 * (in_pad * x_bytes + out_pad * o_bytes)       # x + out, double-buffered

    b_pad0 = _round_up(B, sub)

    use_resident = resident_fixed <= int(VMEM_BUDGET * 0.9)
    cap_rows = 0
    if use_resident:
        cap_rows = (VMEM_BUDGET - resident_fixed) // per_row
        cap_rows = min(1024, (cap_rows // sub) * sub)
        use_resident = cap_rows >= sub

    scratch = []
    if use_resident:
        tm = _pick_batch_tile(b_pad0, sub, cap_rows)
        b_pad = _round_up(b_pad0, tm)
        # Give the second TensorCore (v7x) a grid step when the batch allows it.
        if b_pad // tm == 1 and b_pad >= 2 * sub:
            tm = _round_up((b_pad + 1) // 2, sub)
            b_pad = 2 * tm
        grid = (b_pad // tm,)
        dim_sem = ("parallel",)

        kernel = functools.partial(
            _resident_kernel_act if use_act else _resident_kernel_bias,
            scale=float(scale))

        in_specs = [
            pl.BlockSpec((tm, in_pad), lambda i: (i, 0)),              # x streams over B
            pl.BlockSpec((in_pad, out_pad), lambda i: (0, 0),          # W resident, 1 buffer
                         pipeline_mode=pl.Buffered(1)),
        ]
        operands = [None, w_p]  # x filled in below after padding
        if not use_act:
            in_specs.append(pl.BlockSpec((1, out_pad), lambda i: (0, 0),
                                         pipeline_mode=pl.Buffered(1)))
            operands.append(bias_p)
        out_specs = pl.BlockSpec((tm, out_pad), lambda i: (i, 0))
        footprint = resident_fixed + tm * per_row
    else:
        # Tiled fallback: weight too large to hold resident (v7x-safe path).
        tn = _pick_div_tile(out_pad, 512)
        tk = _pick_div_tile(in_pad, 512)
        tm = _pick_batch_tile(b_pad0, sub, 512)
        b_pad = _round_up(b_pad0, tm)
        if b_pad // tm == 1 and b_pad >= 2 * sub:
            tm = _round_up((b_pad + 1) // 2, sub)
            b_pad = 2 * tm
        grid = (b_pad // tm, out_pad // tn, in_pad // tk)
        dim_sem = ("parallel", "parallel", "arbitrary")

        kernel = functools.partial(
            _tiled_kernel_act if use_act else _tiled_kernel_bias,
            scale=float(scale))

        in_specs = [
            pl.BlockSpec((tm, tk), lambda i, j, k: (i, k)),
            pl.BlockSpec((tk, tn), lambda i, j, k: (k, j)),
        ]
        operands = [None, w_p]
        if not use_act:
            in_specs.append(pl.BlockSpec((1, tn), lambda i, j, k: (0, j)))
            operands.append(bias_p)
        out_specs = pl.BlockSpec((tm, tn), lambda i, j, k: (i, j))
        scratch = [pltpu.VMEM((tm, tn), jnp.float32)]
        footprint = (2 * tm * tk * x_bytes + 2 * tk * tn * w_bytes
                     + 2 * tm * tn * o_bytes + tm * tn * 4 + tn * 4)

    x_p = jnp.pad(x2, ((0, b_pad - B), (0, in_pad - in_dim)))
    operands[0] = x_p

    # Explicit scoped-VMEM limit: never below the 32 MiB default, never above
    # v7x's 64 MiB physical VMEM, sized from the actual footprint + headroom.
    vmem_limit = int(min(64 << 20, max(32 << 20, int(footprint * 1.2) + (2 << 20))))

    cost = pl.CostEstimate(
        flops=2 * b_pad * in_pad * out_pad,
        transcendentals=0,
        bytes_accessed=(b_pad * in_pad * x_bytes
                        + in_pad * out_pad * w_bytes
                        + (0 if use_act else out_pad * 4)
                        + b_pad * out_pad * o_bytes),
    )

    out_p = pl.pallas_call(
        kernel,
        out_shape=jax.ShapeDtypeStruct((b_pad, out_pad), out_dtype),
        grid=grid,
        in_specs=in_specs,
        out_specs=out_specs,
        scratch_shapes=scratch,
        compiler_params=pltpu.CompilerParams(
            dimension_semantics=dim_sem,
            vmem_limit_bytes=vmem_limit,
        ),
        cost_estimate=cost,
    )(*operands)

    out = out_p[:B, :out_dim]
    return out.reshape(orig_shape[:-1] + (out_dim,))


def equal_linear_ref(x, weight, bias, *, lr_mul=1.0, activation=None):
    """Pure-JAX reference mirroring the PyTorch module exactly."""
    scale = 1.0 / math.sqrt(x.shape[-1]) * lr_mul
    if activation is not None:
        out = x @ (weight * scale).T
        return jnp.where(out >= 0, out, 0.2 * out)
    return x @ (weight * scale).T + bias * lr_mul


if __name__ == "__main__":
    # Deterministic synthetic parameters (module __init__ shapes, small case).
    in_dim, out_dim, batch = 32, 48, 8
    lr_mul = 0.5
    bias_init = 0.1

    key = jax.random.PRNGKey(0)
    kx, kw = jax.random.split(key)
    x = jax.random.normal(kx, (batch, in_dim), dtype=jnp.float32)
    weight = jax.random.normal(kw, (out_dim, in_dim), dtype=jnp.float32) / lr_mul
    bias = jnp.full((out_dim,), bias_init, dtype=jnp.float32)

    # No-activation branch: linear + bias*lr_mul.
    out_lin = jax.block_until_ready(
        equal_linear(x, weight, bias, lr_mul=lr_mul, activation=None))
    ref_lin = equal_linear_ref(x, weight, bias, lr_mul=lr_mul, activation=None)
    assert out_lin.shape == (batch, out_dim)
    assert jnp.allclose(out_lin, ref_lin, atol=1e-4, rtol=1e-4)

    # Activation branch: leaky_relu(0.2), no bias — matches the PyTorch code as given.
    out_act = jax.block_until_ready(
        equal_linear(x, weight, None, lr_mul=lr_mul, activation="fused_lrelu"))
    ref_act = equal_linear_ref(x, weight, bias, lr_mul=lr_mul, activation="fused_lrelu")
    assert jnp.allclose(out_act, ref_act, atol=1e-4, rtol=1e-4)

    print("KERNEL_OK")
</pallas_src>

<mosaic_0001>
module attributes {stable_mosaic.version = 11 : i64} {
  func.func @_resident_kernel_bias(%arg0: i32, %arg1: memref<8x128xf32, #tpu.memory_space<vmem>>, %arg2: memref<128x128xf32, #tpu.memory_space<vmem>>, %arg3: memref<1x128xf32, #tpu.memory_space<vmem>>, %arg4: memref<8x128xf32, #tpu.memory_space<vmem>>) attributes {dimension_semantics = [#tpu.dimension_semantics<parallel>], iteration_bounds = array<i64: 1>, scalar_prefetch = 0 : i64, scratch_operands = 0 : i64, tpu.core_type = #tpu.core_type<tc>, window_params = [{transform_indices = @transform_0, window_bounds = array<i64: 8, 128>}, {pipeline_mode = #tpu.pipeline_mode<synchronous>, transform_indices = @transform_1, window_bounds = array<i64: 128, 128>}, {pipeline_mode = #tpu.pipeline_mode<synchronous>, transform_indices = @transform_2, window_bounds = array<i64: 1, 128>}, {transform_indices = @transform_3, window_bounds = array<i64: 8, 128>}]} {
    %c0 = arith.constant 0 : index
    %c0_0 = arith.constant 0 : index
    %0 = vector.load %arg1[%c0, %c0_0] : memref<8x128xf32, #tpu.memory_space<vmem>>, vector<8x128xf32>
    %c0_1 = arith.constant 0 : index
    %c0_2 = arith.constant 0 : index
    %1 = vector.load %arg2[%c0_1, %c0_2] : memref<128x128xf32, #tpu.memory_space<vmem>>, vector<128x128xf32>
    %cst = arith.constant dense<0.000000e+00> : vector<8x128xf32>
    %2 = tpu.matmul %0, %1, %cst {dimension_numbers = #tpu.dot_dimension_numbers<[1], [0], [0], [1], [0, 0, 1, 1], [], []>} : vector<8x128xf32>, vector<128x128xf32>, vector<8x128xf32> -> vector<8x128xf32>
    %cst_3 = arith.constant 0.0883883461 : f32
    %3 = vector.broadcast %cst_3 : f32 to vector<8x128xf32>
    %4 = arith.mulf %2, %3 : vector<8x128xf32>
    %c0_4 = arith.constant 0 : index
    %c0_5 = arith.constant 0 : index
    %5 = vector.load %arg3[%c0_4, %c0_5] : memref<1x128xf32, #tpu.memory_space<vmem>>, vector<1x128xf32>
    %6 = vector.broadcast %5 : vector<1x128xf32> to vector<8x128xf32>
    %7 = arith.addf %4, %6 : vector<8x128xf32>
    %c0_6 = arith.constant 0 : index
    %c0_7 = arith.constant 0 : index
    %8 = vector.load %arg4[%c0_6, %c0_7] : memref<8x128xf32, #tpu.memory_space<vmem>>, vector<8x128xf32>
    tpu.vector_store %arg4[%c0_6, %c0_7], %7 {strides = array<i32>} : memref<8x128xf32, #tpu.memory_space<vmem>>, vector<8x128xf32>,
    return
  }
  func.func @transform_0(%arg0: i32) -> (i32, i32) {
    %c0_i32 = arith.constant 0 : i32
    %c0_i32_0 = arith.constant 0 : i32
    return %arg0, %c0_i32 : i32, i32
  }
  func.func @transform_1(%arg0: i32) -> (i32, i32) {
    %c0_i32 = arith.constant 0 : i32
    %c0_i32_0 = arith.constant 0 : i32
    %c0_i32_1 = arith.constant 0 : i32
    return %c0_i32, %c0_i32_0 : i32, i32
  }
  func.func @transform_2(%arg0: i32) -> (i32, i32) {
    %c0_i32 = arith.constant 0 : i32
    %c0_i32_0 = arith.constant 0 : i32
    %c0_i32_1 = arith.constant 0 : i32
    return %c0_i32, %c0_i32_0 : i32, i32
  }
  func.func @transform_3(%arg0: i32) -> (i32, i32) {
    %c0_i32 = arith.constant 0 : i32
    %c0_i32_0 = arith.constant 0 : i32
    return %arg0, %c0_i32 : i32, i32
  }
}

</mosaic_0001>

<llo_original>
// kernel: tpu_custom_call.1
$region0: #{tpu_custom_call.1}
  #allocation0 [shape = 'u32[]', space=smem, size = 0x4, offset = 0x4, fixed_abs, tag = 'smem constant byte address 0x4 - core index']
  #allocation1 [shape = 'u32[144,128]{1,0:T(1,128)}', space=vmem, size = 0x12000, scoped, tag = 'internal scratch']
  %s0 = inlined_call_operand.hbm [shape: f32[8,128], index: 0, kind: input, shape index: {}]
  %s1 = inlined_call_operand.hbm [shape: f32[128,128], index: 1, kind: input, shape index: {}]
  %s2 = inlined_call_operand.vmem [shape: f32[1,128], index: 2, kind: input, shape index: {}]
  %s3 = inlined_call_operand.hbm [shape: f32[8,128], index: 3, kind: output, shape index: {}]
  %s4 = sld [smem:[#allocation0]]
  $region30: #{tpu_custom_call.1} parent=0
    _
  %s6 = ssub.s32 1, %s4
  %s7 = scalar_select 0, %s6, %s4
  $region1: #{tpu_custom_call.1} parent=0
    #allocation2 [shape = 'u8[4096]{0}', space=vmem, size = 0x1000, scoped, tag = 'input window, operand 0, single buffered']
    #allocation3 [shape = 's32[1]{0}', space=sflag, size = 0x4, scoped, tag = 'scoped memory for tpu_custom_call.1']
    #allocation4 [shape = 's32[1]{0}', space=sflag, size = 0x4, scoped, tag = 'scoped memory for tpu_custom_call.1']
    #allocation5 [shape = 'u8[65536]{0}', space=vmem, size = 0x10000, scoped, tag = 'input window, operand 1, single buffered']
    #allocation6 [shape = 's32[1]{0}', space=sflag, size = 0x4, scoped, tag = 'scoped memory for tpu_custom_call.1']
    #allocation7 [shape = 'u8[4096]{0}', space=vmem, size = 0x1000, scoped, tag = 'output window, operand 0, single buffered']
    %8 = vsyncpa [#allocation3], 0
    %9 = vsyncpa [#allocation6], 0
    %10 = vsyncpa [#allocation4], 0
    // Predicated region
    $region2: #{tpu_custom_call.1} parent=1 // pred_check
      _
    $region3: #{tpu_custom_call.1} parent=1 // pred_check_branch
      %12 = sbr.rel (0) target = $region5
    $region4: #{tpu_custom_call.1} parent=1 // pred_region
      %s14 = ssub.s32 128, 128
      %15 = vsyncadd [#allocation3], %s14
      %s17 = sshll.u32 [#allocation2], 4
      %s18 = int_to_ptr.vmem [resolvable:$true] %s17
      %20 = dma.hbm_to_vmem [thread:$0]  %s0, 128, %s18, [#allocation3]
    $region5: #{tpu_custom_call.1} parent=1 // pred_fallthru
      _
    // Predicated region
    $region6: #{tpu_custom_call.1} parent=1 // pred_check
      _
    $region7: #{tpu_custom_call.1} parent=1 // pred_check_branch
      %22 = sbr.rel (0) target = $region9
    $region8: #{tpu_custom_call.1} parent=1 // pred_region
      %s24 = ssub.s32 2048, 2048
      %25 = vsyncadd [#allocation6], %s24
      %s26 = sshll.u32 [#allocation5], 4
      %s27 = int_to_ptr.vmem [resolvable:$true] %s26
      %32 = dma.hbm_to_vmem [thread:$0]  %s1, 2048, %s27, [#allocation6], 128, 128, 8
    $region9: #{tpu_custom_call.1} parent=1 // pred_fallthru
      _
    // Predicated region
    $region10: #{tpu_custom_call.1} parent=1 // pred_check
      _
    $region11: #{tpu_custom_call.1} parent=1 // pred_check_branch
      %34 = sbr.rel (0) target = $region13
    $region12: #{tpu_custom_call.1} parent=1 // pred_region
      _
    $region13: #{tpu_custom_call.1} parent=1 // pred_fallthru
      _
    // Predicated region
    $region14: #{tpu_custom_call.1} parent=1 // pred_check
      _
    $region15: #{tpu_custom_call.1} parent=1 // pred_check_branch
      %36 = sbr.rel (0) target = $region17
    $region16: #{tpu_custom_call.1} parent=1 // pred_region
      %37 = dma.done [#allocation3], 128
    $region17: #{tpu_custom_call.1} parent=1 // pred_fallthru
      _
    // Predicated region
    $region18: #{tpu_custom_call.1} parent=1 // pred_check
      _
    $region19: #{tpu_custom_call.1} parent=1 // pred_check_branch
      %39 = sbr.rel (0) target = $region21
    $region20: #{tpu_custom_call.1} parent=1 // pred_region
      %40 = dma.done [#allocation6], 2048
    $region21: #{tpu_custom_call.1} parent=1 // pred_fallthru
      _
    %v41 = vld [vmem:[#allocation2] sm:$0xff]
    %v42 = vld [vmem:[#allocation5] sm:$0xff]
    %v43 = vld [vmem:[#allocation5 + $0x8] sm:$0xff]
    %v44 = vld [vmem:[#allocation5 + $0x10] sm:$0xff]
    %v45 = vld [vmem:[#allocation5 + $0x18] sm:$0xff]
    %v46 = vld [vmem:[#allocation5 + $0x20] sm:$0xff]
    %v47 = vld [vmem:[#allocation5 + $0x28] sm:$0xff]
    %v48 = vld [vmem:[#allocation5 + $0x30] sm:$0xff]
    %v49 = vld [vmem:[#allocation5 + $0x38] sm:$0xff]
    %v50 = vld [vmem:[#allocation5 + $0x40] sm:$0xff]
    %v51 = vld [vmem:[#allocation5 + $0x48] sm:$0xff]
    %v52 = vld [vmem:[#allocation5 + $0x50] sm:$0xff]
    %v53 = vld [vmem:[#allocation5 + $0x58] sm:$0xff]
    %v54 = vld [vmem:[#allocation5 + $0x60] sm:$0xff]
    %v55 = vld [vmem:[#allocation5 + $0x68] sm:$0xff]
    %v56 = vld [vmem:[#allocation5 + $0x70] sm:$0xff]
    %v57 = vld [vmem:[#allocation5 + $0x78] sm:$0xff]
    %58 = vmatprep.subr.mxu0 0.0
    %59 = vmatpush1.msra.mxu0 %v42
    %60 = vmatprep.subr.mxu0 0.0
    %61 = vmatpush1.msra.mxu0 %v43
    %62 = vmatprep.subr.mxu0 0.0
    %63 = vmatpush1.msra.mxu0 %v44
    %64 = vmatprep.subr.mxu0 0.0
    %65 = vmatpush1.msra.mxu0 %v45
    %66 = vmatprep.subr.mxu0 0.0
    %67 = vmatpush1.msra.mxu0 %v46
    %68 = vmatprep.subr.mxu0 0.0
    %69 = vmatpush1.msra.mxu0 %v47
    %70 = vmatprep.subr.mxu0 0.0
    %71 = vmatpush1.msra.mxu0 %v48
    %72 = vmatprep.subr.mxu0 0.0
    %73 = vmatpush1.msra.mxu0 %v49
    %74 = vmatprep.subr.mxu0 0.0
    %75 = vmatpush1.msra.mxu0 %v50
    %76 = vmatprep.subr.mxu0 0.0
    %77 = vmatpush1.msra.mxu0 %v51
    %78 = vmatprep.subr.mxu0 0.0
    %79 = vmatpush1.msra.mxu0 %v52
    %80 = vmatprep.subr.mxu0 0.0
    %81 = vmatpush1.msra.mxu0 %v53
    %82 = vmatprep.subr.mxu0 0.0
    %83 = vmatpush1.msra.mxu0 %v54
    %84 = vmatprep.subr.mxu0 0.0
    %85 = vmatpush1.msra.mxu0 %v55
    %86 = vmatprep.subr.mxu0 0.0
    %87 = vmatpush1.msra.mxu0 %v56
    %88 = vmatprep.subr.mxu0 0.0
    %89 = vmatpush1.msra.mxu0 %v57
    %90 = vmatprep.subr.mxu0 0.0
    %91 = vmatpush1.msra.mxu0 0.0
    %92 = vmatprep.subr.mxu0 0.0
    %93 = vmatpush1.msra.mxu0 0.0
    %94 = vmatprep.subr.mxu0 0.0
    %95 = vmatpush1.msra.mxu0 0.0
    %96 = vmatprep.subr.mxu0 0.0
    %97 = vmatpush1.msra.mxu0 0.0
    %98 = vmatprep.subr.mxu0 0.0
    %99 = vmatpush1.msra.mxu0 0.0
    %100 = vmatprep.subr.mxu0 0.0
    %101 = vmatpush1.msra.mxu0 0.0
    %102 = vmatprep.subr.mxu0 0.0
    %103 = vmatpush1.msra.mxu0 0.0
    %104 = vmatprep.subr.mxu0 0.0
    %105 = vmatpush1.msra.mxu0 0.0
    %106 = vmatprep.subr.mxu0 0.0
    %107 = vmatpush1.msra.mxu0 0.0
    %108 = vmatprep.subr.mxu0 0.0
    %109 = vmatpush1.msra.mxu0 0.0
    %110 = vmatprep.subr.mxu0 0.0
    %111 = vmatpush1.msra.mxu0 0.0
    %112 = vmatprep.subr.mxu0 0.0
    %113 = vmatpush1.msra.mxu0 0.0
    %114 = vmatprep.subr.mxu0 0.0
    %115 = vmatpush1.msra.mxu0 0.0
    %116 = vmatprep.subr.mxu0 0.0
    %117 = vmatpush1.msra.mxu0 0.0
    %118 = vmatprep.subr.mxu0 0.0
    %119 = vmatpush1.msra.mxu0 0.0
    %120 = vmatprep.subr.mxu0 0.0
    %121 = vmatpush1.msra.mxu0 0.0
    %122 = vmatprep.mubr.f32.mxu0 0.0
    %123 = vmatmul.mubr.f32.gmra.mrb[0].mxu0 %v41
    %v124 = vpop.f32.mrb[0].mxu0
    %v125 = vadd.f32 0.0, %v124
    %v126 = vpop.f32.mrb[0].mxu0
    %127 = vdwg.mxu0
    %v128 = vmul.f32 %v125, 0.088388346
    %v129 = vld [vmem:[%s2] sm:$0x1]
    %v131 = vlaneseq
    %v132 = vshrl.u32 %v131, 7
    %v133 = vsub.s32 0, %v132
    %v134 = vrot.slane %v129, %v133
    %v136 = vadd.f32 %v128, %v134
    %137 = vst [vmem:[#allocation7] sm:$0xff] %v136
    // Predicated region
    $region22: #{tpu_custom_call.1} parent=1 // pred_check
      _
    $region23: #{tpu_custom_call.1} parent=1 // pred_check_branch
      %139 = sbr.rel (0) target = $region25
    $region24: #{tpu_custom_call.1} parent=1 // pred_region
      %s141 = ssub.s32 128, 128
      %142 = vsyncadd [#allocation4], %s141
      %s144 = sshll.u32 [#allocation7], 4
      %s145 = int_to_ptr.vmem [resolvable:$true] %s144
      %147 = dma.vmem_to_hbm [thread:$0]  %s145, 128, %s3, [#allocation4]
    $region25: #{tpu_custom_call.1} parent=1 // pred_fallthru
      _
    // Predicated region
    $region26: #{tpu_custom_call.1} parent=1 // pred_check
      _
    $region27: #{tpu_custom_call.1} parent=1 // pred_check_branch
      %149 = sbr.rel (0) target = $region29
    $region28: #{tpu_custom_call.1} parent=1 // pred_region
      %150 = dma.done [#allocation4], 128
    $region29: #{tpu_custom_call.1} parent=1 // pred_fallthru
      _
    %151 = vsyncpa [#allocation3], 1
    %152 = vsyncpa [#allocation6], 1
    %153 = vsyncpa [#allocation4], 1

</llo_original>
